<compile_context>
chip_gen: v7x
topology: tpu7x:2x2x1
jax: 0.10.0
libtpu: 0.0.40
codegen_flags: <defaults>
</compile_context>

<pallas_src>
import jax
import jax.numpy as jnp
from jax.experimental import pallas as pl
from jax.experimental.pallas import tpu as pltpu
import functools


def _convt_clamp_kernel(x_ref, w_ref, o_ref, *, K, C_in, L, L_out,
                        min_value, max_value):
    # x_ref : (C_in, L)          VMEM — unpadded input (batch squeezed in wrapper)
    # w_ref : (C_out, K*C_in+1)  VMEM — flipped/flattened weight, bias in last col
    # o_ref : (C_out, L_out)     VMEM
    xv = x_ref[...]                                          # (C_in, L)

    # Build the K shifted windows in-register: window k = [0]*(K-1-k) ++ x ++ [0]*k
    # (== zero-padded-x[:, k : k+L_out]).  No scratch, no Ref slices, no roll.
    rows = []
    for k in range(K):
        left, right = K - 1 - k, k
        parts = []
        if left > 0:
            parts.append(jnp.zeros((C_in, left), jnp.float32))
        parts.append(xv)
        if right > 0:
            parts.append(jnp.zeros((C_in, right), jnp.float32))
        rows.append(jnp.concatenate(parts, axis=1) if len(parts) > 1 else xv)
    rows.append(jnp.ones((1, L_out), jnp.float32))           # bias row (constant 1s)
    xs = jnp.concatenate(rows, axis=0)                       # (K*C_in + 1, L_out)

    # One small MXU matmul does conv + bias (bias rides the extra contraction row).
    acc = jnp.dot(w_ref[...], xs, preferred_element_type=jnp.float32)  # (C_out, L_out)

    # clamp_min then clamp_max on the VPU.
    acc = jnp.maximum(acc, jnp.float32(min_value))
    acc = jnp.minimum(acc, jnp.float32(max_value))
    o_ref[...] = acc.astype(o_ref.dtype)


class ConvTranspose1dClamp:
    """Pallas equivalent of: ConvTranspose1d(C_in, C_out, K) -> clamp_min -> clamp_max.

    Weight prep is done ONCE here (not per call):
      w2[co, k*C_in + ci] = weight[ci, co, K-1-k]   (flip + lane-major flatten)
      w2_aug = [w2 | bias]                          (bias folded into the matmul)
    """

    def __init__(self, weight, bias, min_value=5.0, max_value=16.0):
        C_in, C_out, K = weight.shape
        self.C_in, self.C_out, self.K = C_in, C_out, K
        self.min_value, self.max_value = float(min_value), float(max_value)

        w_flip = jnp.flip(weight, axis=2)                               # (C_in, C_out, K)
        w2 = jnp.transpose(w_flip, (1, 2, 0)).reshape(C_out, K * C_in)  # (C_out, K*C_in)
        w2_aug = jnp.concatenate([w2, bias.reshape(C_out, 1)], axis=1)  # (C_out, K*C_in+1)
        self.w2_aug = jax.device_put(w2_aug)                            # concrete, reused

    def __call__(self, x):
        # x: (1, C_in, L) -> (1, C_out, L + K - 1)
        N, C_in, L = x.shape
        assert N == 1 and C_in == self.C_in
        K, C_out = self.K, self.C_out
        L_out = L + K - 1

        kernel = functools.partial(
            _convt_clamp_kernel,
            K=K, C_in=C_in, L=L, L_out=L_out,
            min_value=self.min_value, max_value=self.max_value,
        )
        out = pl.pallas_call(
            kernel,
            out_shape=jax.ShapeDtypeStruct((C_out, L_out), jnp.float32),
            in_specs=[
                pl.BlockSpec(memory_space=pltpu.MemorySpace.VMEM),   # x (whole array)
                pl.BlockSpec(memory_space=pltpu.MemorySpace.VMEM),   # w2_aug
            ],
            out_specs=pl.BlockSpec(memory_space=pltpu.MemorySpace.VMEM),
        )(x[0], self.w2_aug)
        return out[None]  # restore batch dim


if __name__ == "__main__":
    key = jax.random.PRNGKey(0)
    k_x, k_w, k_b = jax.random.split(key, 3)

    C_in, C_out, K, L = 4, 2, 3, 20
    x1 = jax.random.normal(k_x, (1, C_in, L), dtype=jnp.float32)
    # ConvTranspose1d parameter layout: weight (C_in, C_out, K), bias (C_out,)
    weight = jax.random.normal(k_w, (C_in, C_out, K), dtype=jnp.float32) * 0.3
    bias = jax.random.normal(k_b, (C_out,), dtype=jnp.float32) * 0.1

    model = ConvTranspose1dClamp(weight, bias, min_value=5, max_value=16)
    y = jax.block_until_ready(model(x1))

    # Pure-JAX reference of the PyTorch module:
    # out[n, co, j+k] += x[n, ci, j] * weight[ci, co, k]; then + bias; then clamp.
    ref = jnp.zeros((1, C_out, L + K - 1), jnp.float32)
    for j in range(L):
        for k in range(K):
            ref = ref.at[:, :, j + k].add(
                jnp.einsum("nc,co->no", x1[:, :, j], weight[:, :, k]))
    ref = ref + bias[None, :, None]
    ref = jnp.clip(ref, 5.0, 16.0)

    assert y.shape == (1, C_out, L + K - 1)
    assert y.dtype == jnp.float32
    assert jnp.allclose(y, ref, atol=1e-5, rtol=1e-5)
    print("KERNEL_OK")
</pallas_src>

<mosaic_0001>
module attributes {stable_mosaic.version = 11 : i64} {
  func.func @_convt_clamp_kernel(%arg0: memref<4x20xf32, #tpu.memory_space<vmem>>, %arg1: memref<2x13xf32, #tpu.memory_space<vmem>>, %arg2: memref<2x22xf32, #tpu.memory_space<vmem>>) attributes {dimension_semantics = [], scalar_prefetch = 0 : i64, scratch_operands = 0 : i64, tpu.core_type = #tpu.core_type<tc>} {
    %c0 = arith.constant 0 : index
    %c0_0 = arith.constant 0 : index
    %0 = vector.load %arg0[%c0, %c0_0] : memref<4x20xf32, #tpu.memory_space<vmem>>, vector<4x20xf32>
    %cst = arith.constant 0.000000e+00 : f32
    %1 = vector.broadcast %cst : f32 to vector<4x2xf32>
    %2 = tpu.concatenate %1, %0 in 1 : vector<4x2xf32>, vector<4x20xf32> -> vector<4x22xf32>
    %cst_1 = arith.constant 0.000000e+00 : f32
    %3 = vector.broadcast %cst_1 : f32 to vector<4x1xf32>
    %cst_2 = arith.constant 0.000000e+00 : f32
    %4 = vector.broadcast %cst_2 : f32 to vector<4x1xf32>
    %5 = tpu.concatenate %3, %0, %4 in 1 : vector<4x1xf32>, vector<4x20xf32>, vector<4x1xf32> -> vector<4x22xf32>
    %cst_3 = arith.constant 0.000000e+00 : f32
    %6 = vector.broadcast %cst_3 : f32 to vector<4x2xf32>
    %7 = tpu.concatenate %0, %6 in 1 : vector<4x20xf32>, vector<4x2xf32> -> vector<4x22xf32>
    %cst_4 = arith.constant 1.000000e+00 : f32
    %8 = vector.broadcast %cst_4 : f32 to vector<1x22xf32>
    %9 = tpu.concatenate %2, %5, %7, %8 in 0 : vector<4x22xf32>, vector<4x22xf32>, vector<4x22xf32>, vector<1x22xf32> -> vector<13x22xf32>
    %c0_5 = arith.constant 0 : index
    %c0_6 = arith.constant 0 : index
    %10 = vector.load %arg1[%c0_5, %c0_6] : memref<2x13xf32, #tpu.memory_space<vmem>>, vector<2x13xf32>
    %cst_7 = arith.constant dense<0.000000e+00> : vector<2x22xf32>
    %11 = tpu.matmul %10, %9, %cst_7 {dimension_numbers = #tpu.dot_dimension_numbers<[1], [0], [0], [1], [0, 0, 1, 1], [], []>} : vector<2x13xf32>, vector<13x22xf32>, vector<2x22xf32> -> vector<2x22xf32>
    %cst_8 = arith.constant 5.000000e+00 : f32
    %12 = vector.broadcast %cst_8 : f32 to vector<2x22xf32>
    %13 = arith.maximumf %11, %12 : vector<2x22xf32>
    %cst_9 = arith.constant 1.600000e+01 : f32
    %14 = vector.broadcast %cst_9 : f32 to vector<2x22xf32>
    %15 = arith.minimumf %13, %14 : vector<2x22xf32>
    %c0_10 = arith.constant 0 : index
    %c0_11 = arith.constant 0 : index
    %16 = vector.load %arg2[%c0_10, %c0_11] : memref<2x22xf32, #tpu.memory_space<vmem>>, vector<2x22xf32>
    tpu.vector_store %arg2[%c0_10, %c0_11], %15 {strides = array<i32>} : memref<2x22xf32, #tpu.memory_space<vmem>>, vector<2x22xf32>,
    return
  }
}

</mosaic_0001>

<llo_original>
// kernel: tpu_custom_call.1
$region0: #{tpu_custom_call.1}
  #allocation0 [shape = 'u32[]', space=smem, size = 0x4, offset = 0x4, fixed_abs, tag = 'smem constant byte address 0x4 - core index']
  #allocation1 [shape = 'u32[144,128]{1,0:T(1,128)}', space=vmem, size = 0x12000, scoped, tag = 'internal scratch']
  %s0 = inlined_call_operand.hbm [shape: f32[4,20], index: 0, kind: input, shape index: {}]
  %s1 = inlined_call_operand.vmem [shape: f32[2,13], index: 1, kind: input, shape index: {}]
  %s2 = inlined_call_operand.hbm [shape: f32[2,22], index: 2, kind: output, shape index: {}]
  %s3 = sld [smem:[#allocation0]]
  $region22: #{tpu_custom_call.1} parent=0
    _
  %s5 = ssub.s32 1, %s3
  %s6 = scalar_select 0, %s5, %s3
  $region1: #{tpu_custom_call.1} parent=0
    #allocation2 [shape = 'u8[2048]{0}', space=vmem, size = 0x800, scoped, tag = 'input window, operand 0, single buffered']
    #allocation3 [shape = 's32[1]{0}', space=sflag, size = 0x4, scoped, tag = 'scoped memory for tpu_custom_call.1']
    #allocation4 [shape = 's32[1]{0}', space=sflag, size = 0x4, scoped, tag = 'scoped memory for tpu_custom_call.1']
    #allocation5 [shape = 'u8[1024]{0}', space=vmem, size = 0x400, scoped, tag = 'output window, operand 0, single buffered']
    %7 = vsyncpa [#allocation3], 0
    %8 = vsyncpa [#allocation4], 0
    // Predicated region
    $region2: #{tpu_custom_call.1} parent=1 // pred_check
      _
    $region3: #{tpu_custom_call.1} parent=1 // pred_check_branch
      %10 = sbr.rel (0) target = $region5
    $region4: #{tpu_custom_call.1} parent=1 // pred_region
      %s12 = ssub.s32 64, 64
      %13 = vsyncadd [#allocation3], %s12
      %s15 = sshll.u32 [#allocation2], 4
      %s16 = int_to_ptr.vmem [resolvable:$true] %s15
      %18 = dma.hbm_to_vmem [thread:$0]  %s0, 64, %s16, [#allocation3]
    $region5: #{tpu_custom_call.1} parent=1 // pred_fallthru
      _
    // Predicated region
    $region6: #{tpu_custom_call.1} parent=1 // pred_check
      _
    $region7: #{tpu_custom_call.1} parent=1 // pred_check_branch
      %20 = sbr.rel (0) target = $region9
    $region8: #{tpu_custom_call.1} parent=1 // pred_region
      _
    $region9: #{tpu_custom_call.1} parent=1 // pred_fallthru
      _
    // Predicated region
    $region10: #{tpu_custom_call.1} parent=1 // pred_check
      _
    $region11: #{tpu_custom_call.1} parent=1 // pred_check_branch
      %22 = sbr.rel (0) target = $region13
    $region12: #{tpu_custom_call.1} parent=1 // pred_region
      %23 = dma.done [#allocation3], 64
    $region13: #{tpu_custom_call.1} parent=1 // pred_fallthru
      _
    %v24 = vld [vmem:[#allocation2] sm:$0xf]
    %26 = vrot.lane.b32.xlu0 %v24, 2
    %v27 = vpop.permute.xlu0 %26
    %vm29 = vcmask 15360
    %v30 = vsel %vm29, 0.0, %v27
    %31 = vrot.lane.b32.xlu0 %v24, 1
    %v32 = vpop.permute.xlu0 %31
    %vm34 = vcmask 7168
    %v35 = vsel %vm34, 0.0, %v32
    %vm36 = vcmask 171008
    %v37 = vsel %vm36, %v35, 0.0
    %vm38 = vcmask 162816
    %v39 = vsel %vm38, %v24, 0.0
    %v41 = vrot.slane %v37, 4
    %vm43 = vcmask 1043456
    %v44 = vsel %vm43, %v30, %v41
    %v45 = vsel %vm43, %v39, 1.0
    %v46 = vld [vmem:[%s1] sm:$0x3]
    %vm47 = vcmask 105472
    %v49 = vsel %vm47, %v46, 0
    %vm51 = vcmask 1044480
    %v53 = vsel %vm51, %v45, 0
    %55 = vmatprep.subr.mxu0 0.0
    %56 = vmatpush1.msra.mxu0 %v44
    %57 = vmatprep.subr.mxu0 0.0
    %58 = vmatpush1.msra.mxu0 %v53
    %59 = vmatprep.subr.mxu0 0.0
    %60 = vmatpush1.msra.mxu0 0.0
    %61 = vmatprep.subr.mxu0 0.0
    %62 = vmatpush1.msra.mxu0 0.0
    %63 = vmatprep.subr.mxu0 0.0
    %64 = vmatpush1.msra.mxu0 0.0
    %65 = vmatprep.subr.mxu0 0.0
    %66 = vmatpush1.msra.mxu0 0.0
    %67 = vmatprep.subr.mxu0 0.0
    %68 = vmatpush1.msra.mxu0 0.0
    %69 = vmatprep.subr.mxu0 0.0
    %70 = vmatpush1.msra.mxu0 0.0
    %71 = vmatprep.subr.mxu0 0.0
    %72 = vmatpush1.msra.mxu0 0.0
    %73 = vmatprep.subr.mxu0 0.0
    %74 = vmatpush1.msra.mxu0 0.0
    %75 = vmatprep.subr.mxu0 0.0
    %76 = vmatpush1.msra.mxu0 0.0
    %77 = vmatprep.subr.mxu0 0.0
    %78 = vmatpush1.msra.mxu0 0.0
    %79 = vmatprep.subr.mxu0 0.0
    %80 = vmatpush1.msra.mxu0 0.0
    %81 = vmatprep.subr.mxu0 0.0
    %82 = vmatpush1.msra.mxu0 0.0
    %83 = vmatprep.subr.mxu0 0.0
    %84 = vmatpush1.msra.mxu0 0.0
    %85 = vmatprep.subr.mxu0 0.0
    %86 = vmatpush1.msra.mxu0 0.0
    %87 = vmatprep.subr.mxu0 0.0
    %88 = vmatpush1.msra.mxu0 0.0
    %89 = vmatprep.subr.mxu0 0.0
    %90 = vmatpush1.msra.mxu0 0.0
    %91 = vmatprep.subr.mxu0 0.0
    %92 = vmatpush1.msra.mxu0 0.0
    %93 = vmatprep.subr.mxu0 0.0
    %94 = vmatpush1.msra.mxu0 0.0
    %95 = vmatprep.subr.mxu0 0.0
    %96 = vmatpush1.msra.mxu0 0.0
    %97 = vmatprep.subr.mxu0 0.0
    %98 = vmatpush1.msra.mxu0 0.0
    %99 = vmatprep.subr.mxu0 0.0
    %100 = vmatpush1.msra.mxu0 0.0
    %101 = vmatprep.subr.mxu0 0.0
    %102 = vmatpush1.msra.mxu0 0.0
    %103 = vmatprep.subr.mxu0 0.0
    %104 = vmatpush1.msra.mxu0 0.0
    %105 = vmatprep.subr.mxu0 0.0
    %106 = vmatpush1.msra.mxu0 0.0
    %107 = vmatprep.subr.mxu0 0.0
    %108 = vmatpush1.msra.mxu0 0.0
    %109 = vmatprep.subr.mxu0 0.0
    %110 = vmatpush1.msra.mxu0 0.0
    %111 = vmatprep.subr.mxu0 0.0
    %112 = vmatpush1.msra.mxu0 0.0
    %113 = vmatprep.subr.mxu0 0.0
    %114 = vmatpush1.msra.mxu0 0.0
    %115 = vmatprep.subr.mxu0 0.0
    %116 = vmatpush1.msra.mxu0 0.0
    %117 = vmatprep.subr.mxu0 0.0
    %118 = vmatpush1.msra.mxu0 0.0
    %119 = vmatprep.mubr.f32.mxu0 0.0
    %120 = vmatmul.mubr.f32.gmra.mrb[0].mxu0 %v49
    %v121 = vpop.f32.mrb[0].mxu0
    %v122 = vadd.f32 0.0, %v121
    %v123 = vpop.f32.mrb[0].mxu0
    %124 = vdwg.mxu0
    %v125 = vmax.f32 %v122, 5.0
    %v126 = vmin.f32 %v125, 16.0
    %vm127 = vcmask 173056
    %128 = vst.msk [vmem:[#allocation5] sm:$0x3] %vm127, %v126
    // Predicated region
    $region14: #{tpu_custom_call.1} parent=1 // pred_check
      _
    $region15: #{tpu_custom_call.1} parent=1 // pred_check_branch
      %130 = sbr.rel (0) target = $region17
    $region16: #{tpu_custom_call.1} parent=1 // pred_region
      %s132 = ssub.s32 32, 32
      %133 = vsyncadd [#allocation4], %s132
      %s135 = sshll.u32 [#allocation5], 4
      %s136 = int_to_ptr.vmem [resolvable:$true] %s135
      %138 = dma.vmem_to_hbm [thread:$0]  %s136, 32, %s2, [#allocation4]
    $region17: #{tpu_custom_call.1} parent=1 // pred_fallthru
      _
    // Predicated region
    $region18: #{tpu_custom_call.1} parent=1 // pred_check
      _
    $region19: #{tpu_custom_call.1} parent=1 // pred_check_branch
      %140 = sbr.rel (0) target = $region21
    $region20: #{tpu_custom_call.1} parent=1 // pred_region
      %141 = dma.done [#allocation4], 32
    $region21: #{tpu_custom_call.1} parent=1 // pred_fallthru
      _
    %142 = vsyncpa [#allocation3], 1
    %143 = vsyncpa [#allocation4], 1

</llo_original>
